<compile_context>
chip_gen: v7x
topology: tpu7x:2x2x1
jax: 0.10.0
libtpu: 0.0.40
codegen_flags: <defaults>
</compile_context>

<pallas_src>
import functools

import jax
import jax.numpy as jnp
import numpy as np
from jax.experimental import pallas as pl
from jax.experimental.pallas import tpu as pltpu


def _round_up(x, m):
    return (x + m - 1) // m * m


# ------------------------------ Pallas kernel ------------------------------ #

def _conv_tap_kernel(x_ref, w_ref, b_ref, o_ref, *, kp, cb, apply_tanh):
    """One (batch, C_out-tile, L-tile) grid step of a stride-1 tap conv.

    x_ref: (TL + kp - 1, CB)  halo'd activation window (bf16)
    w_ref: (kp * CB, TC)      this C-tile's packed weights (bf16), resident
    b_ref: (1, TC)            f32 bias
    o_ref: (TL, TC)           bf16 lane-dense output tile
    """
    tl = o_ref.shape[0]
    acc = jnp.dot(x_ref[0:tl, :], w_ref[0:cb, :],
                  preferred_element_type=jnp.float32)
    for j in range(1, kp):                       # short, static, unrolled taps
        acc = acc + jnp.dot(x_ref[j:j + tl, :],
                            w_ref[j * cb:(j + 1) * cb, :],
                            preferred_element_type=jnp.float32)
    y = acc + b_ref[...]                         # f32 epilogue
    if apply_tanh:
        y = jnp.tanh(y)                          # f32 EUP (v5e has no bf16 EUP)
    o_ref[...] = y.astype(o_ref.dtype)           # lane-dense store


# --------------------------- weight preparation ---------------------------- #

def _pack_weights(w_pt, groups, s, kp, fold, use_bands, n_ct, tc, cb, c_work_p,
                  compute_dtype):
    """PyTorch grouped (C_out, C_in/G, K) weight -> per-C-tile packed blocks.

    Output (n_ct, kp_eff * cb, tc): taps in channel-major (channel, phase)
    space-to-depth order.  With `use_bands` each output tile keeps only its
    own groups' contiguous input-channel band (no block-diagonal zeros)."""
    c_out, cig, K = w_pt.shape
    c_in = cig * groups
    c_sd = c_in * s
    cop = n_ct * tc
    w = jnp.asarray(w_pt, jnp.float32)
    w = jnp.pad(w, ((0, 0), (0, 0), (0, kp * s - K)))          # taps -> kp*s
    w = w.reshape(c_out, cig, kp, s).transpose(2, 1, 3, 0)      # (kp,cig,s,Cout)
    if groups == 1:
        W = w                                                   # cig == C_in
    else:
        wg = w.reshape(kp, cig, s, groups, c_out // groups)
        eye = jnp.eye(groups, dtype=w.dtype)
        W = jnp.einsum("jcpgo,hg->jhcpgo", wg, eye)             # block-diagonal
        W = W.reshape(kp, c_in, s, c_out)
    W_sd = W.reshape(kp, c_sd, c_out)                           # sd chan = c*s+p
    if fold:                                                    # all taps -> channels
        W_sd = W_sd.reshape(1, kp * c_sd, c_out)
    kp_eff, c_work = W_sd.shape[0], W_sd.shape[1]
    W_sd = jnp.pad(W_sd, ((0, 0), (0, c_work_p - c_work), (0, cop - c_out)))
    if use_bands:
        Wr = W_sd.reshape(kp_eff, n_ct, cb, n_ct, tc)
        W_packed = jnp.einsum("jacbo,ab->bjco", Wr,
                              jnp.eye(n_ct, dtype=W_sd.dtype))  # pick own band
        W_packed = W_packed.reshape(n_ct, kp_eff * cb, tc)
    else:
        W_packed = W_sd.reshape(kp_eff * c_work_p, n_ct, tc).transpose(1, 0, 2)
    return W_packed.astype(compute_dtype)


# --------------------------- conv layer wrapper ---------------------------- #

def conv1d_pallas(x_nlc, w_pt, bias, *, stride, padding, pad_mode, groups,
                  apply_tanh, compute_dtype=jnp.bfloat16):
    """Weight-normalized Conv1d (+ optional Tanh) on channels-last (N, L, C_in)."""
    N, L, C_in = x_nlc.shape
    C_out, cig, K = w_pt.shape
    s = int(stride)
    assert C_in == cig * groups and C_out % groups == 0
    cog = C_out // groups

    x = x_nlc.astype(compute_dtype)
    if padding > 0:
        mode = "reflect" if pad_mode == "reflect" else "constant"
        x = jnp.pad(x, ((0, 0), (padding, padding), (0, 0)), mode=mode)
    L_pad = L + 2 * padding
    L_out = (L_pad - K) // s + 1
    Kp = -(-K // s)                        # taps after space-to-depth
    C_sd = C_in * s                        # sd channels, (channel, phase)-major

    # Output-channel tiling: 256-wide on the wide layers (v6e/v7x MXU),
    # 128 otherwise; always lane-dense stores.
    # TODO(synk): the 1-channel final layer still pads to 128 lanes; a VPU
    # reduction epilogue fused into the previous layer would avoid the wasted
    # MXU columns (small absolute cost, noted per review).
    TC = 128 if C_out <= 128 else 256
    COp = _round_up(C_out, TC)
    nC = COp // TC

    # Group-band compression: each output tile only reads its own groups'
    # contiguous input-channel band.
    band_ok = groups > 1 and TC % cog == 0 and ((TC // cog) * cig * s) % 128 == 0
    use_bands = band_ok and nC > 1
    # TODO(synk): for many-group layers whose group sizes don't align to the
    # 128-lane band requirement we fall back to the dense block-diagonal form.

    # Tiny contractions: fold all taps into the channel axis -> single matmul.
    fold = (not use_bands) and (C_sd * Kp <= 256)

    # L tiling: large tiles amortize the ~0.35us/step overhead; multiples of 16
    # keep bf16 sublane packing dense.
    TL = min(1024, _round_up(L_out, 16))
    nLt = pl.cdiv(L_out, TL)
    Lp = nLt * TL
    Kp_eff = 1 if fold else Kp
    TLin = TL + Kp_eff - 1                 # halo'd input window per L tile

    # Space-to-depth: strided conv -> stride-1 conv with Kp taps over s*C_in
    # channels.  Extra zero tail only ever meets zero weight taps (exact).
    L_sd = Lp + Kp - 1
    target = L_sd * s
    if target >= L_pad:
        x = jnp.pad(x, ((0, 0), (0, target - L_pad), (0, 0)))
    else:                                  # tail rows provably unused
        x = x[:, :target, :]
    x_sd = x.reshape(N, L_sd, s, C_in).transpose(0, 1, 3, 2).reshape(N, L_sd, C_sd)

    if fold:
        x_work = jnp.concatenate([x_sd[:, j:j + Lp, :] for j in range(Kp)],
                                 axis=-1)
        C_work = C_sd * Kp
    else:
        x_work = x_sd
        C_work = C_sd

    if use_bands:
        CB = (TC // cog) * cig * s
        C_work_p = nC * CB
    else:
        CB = C_work
        C_work_p = C_work
    if C_work_p > C_work:
        x_work = jnp.pad(x_work, ((0, 0), (0, 0), (0, C_work_p - C_work)))

    # Overlapping halo'd L tiles (duplication only (Kp_eff-1)/TL, a few %).
    # TODO(synk): a pl.Element-offset L BlockSpec on x_work would avoid even
    # this small duplication.
    x_tiles = jnp.stack(
        [jax.lax.dynamic_slice_in_dim(x_work, t * TL, TLin, axis=1)
         for t in range(nLt)], axis=1)      # (N, nLt, TLin, C_work_p)

    W_packed = _pack_weights(w_pt, groups, s, Kp, fold, use_bands, nC, TC, CB,
                             C_work_p, compute_dtype)   # (nC, Kp_eff*CB, TC)
    b2 = jnp.pad(bias.astype(jnp.float32), (0, COp - C_out)).reshape(1, COp)

    # Grid (N, C_tiles, L_tiles): no reduction grid axis, so every axis is
    # "parallel" (megacore-friendly); the weight/bias index_maps ignore the
    # innermost L axis so their blocks are DMA'd once per (n, c).
    itemsize = jnp.dtype(compute_dtype).itemsize
    x_blk = TLin * CB * itemsize
    w_blk = Kp_eff * CB * TC * itemsize
    o_blk = TL * TC * itemsize
    needed = (2 * (x_blk + w_blk + o_blk) + TL * TC * 4
              + TL * CB * itemsize + (2 << 20))
    vmem_limit = int(min(max(needed, 32 << 20), 64 << 20))

    flops = 2 * N * nC * nLt * TL * TC * Kp_eff * CB
    transcendentals = N * Lp * COp if apply_tanh else 0
    bytes_accessed = (N * nLt * TLin * C_work_p * itemsize
                      + N * nC * w_blk
                      + N * Lp * COp * itemsize
                      + COp * 4)

    x_index = ((lambda n, c, t: (n, t, 0, c)) if use_bands
               else (lambda n, c, t: (n, t, 0, 0)))

    out = pl.pallas_call(
        functools.partial(_conv_tap_kernel, kp=Kp_eff, cb=CB,
                          apply_tanh=apply_tanh),
        out_shape=jax.ShapeDtypeStruct((N, Lp, COp), compute_dtype),
        grid=(N, nC, nLt),
        in_specs=[
            pl.BlockSpec((pl.Squeezed(), pl.Squeezed(), TLin, CB), x_index),
            pl.BlockSpec((pl.Squeezed(), Kp_eff * CB, TC),
                         lambda n, c, t: (c, 0, 0)),
            pl.BlockSpec((1, TC), lambda n, c, t: (0, c)),
        ],
        out_specs=pl.BlockSpec((pl.Squeezed(), TL, TC),
                               lambda n, c, t: (n, t, c)),
        compiler_params=pltpu.CompilerParams(
            dimension_semantics=("parallel", "parallel", "parallel"),
            vmem_limit_bytes=vmem_limit),
        cost_estimate=pl.CostEstimate(flops=flops,
                                      transcendentals=transcendentals,
                                      bytes_accessed=bytes_accessed),
    )(x_tiles, W_packed, b2)
    return out[:, :L_out, :C_out]


# --------------------------- parameter plumbing ---------------------------- #

def weight_norm_params(key, c_out, c_in_g, K):
    """Deterministic WNConv1d params: effective w = g * v / ||v|| (per out-ch)."""
    kv, kg, kb = jax.random.split(key, 3)
    v = 0.1 * jax.random.normal(kv, (c_out, c_in_g, K), jnp.float32)
    g = 0.5 + jax.random.uniform(kg, (c_out, 1, 1), jnp.float32)
    norm = jnp.sqrt(jnp.sum(v * v, axis=(1, 2), keepdims=True))
    w = g * v / norm
    b = 0.1 * jax.random.normal(kb, (c_out,), jnp.float32)
    return w, b


def build_discriminator_params(key, ndf, n_layers, downsampling_factor):
    """Mirrors NLayerDiscriminator.__init__ exactly (same shapes / wiring)."""
    layers = []
    # layer_0: ReflectionPad1d(7) -> WNConv1d(1, ndf, 15) -> Tanh
    key, sub = jax.random.split(key)
    w, b = weight_norm_params(sub, ndf, 1, 15)
    layers.append(dict(w_pt=w, b=b, stride=1, pad=7, pad_mode="reflect",
                       groups=1, tanh=True))
    nf = ndf
    stride = downsampling_factor
    for n in range(1, n_layers + 1):
        nf_prev = nf
        nf = min(nf * stride, 1024)
        groups = nf_prev // 4
        key, sub = jax.random.split(key)
        w, b = weight_norm_params(sub, nf, nf_prev // groups, stride * 10 + 1)
        layers.append(dict(w_pt=w, b=b, stride=stride, pad=stride * 5,
                           pad_mode="zero", groups=groups, tanh=True))
    nf = min(nf * 2, 1024)
    # NOTE: faithfully reproduces the reference __init__, which wires this
    # layer's input channels to the *stale* nf_prev from the loop above.
    key, sub = jax.random.split(key)
    w, b = weight_norm_params(sub, nf, nf_prev, 5)
    layers.append(dict(w_pt=w, b=b, stride=1, pad=2, pad_mode="zero",
                       groups=1, tanh=True))
    key, sub = jax.random.split(key)
    w, b = weight_norm_params(sub, 1, nf, 3)
    layers.append(dict(w_pt=w, b=b, stride=1, pad=1, pad_mode="zero",
                       groups=1, tanh=False))
    return layers


# ------------------------------- forward ----------------------------------- #

def discriminator_forward(layers, x_ncl, compute_dtype=jnp.bfloat16):
    """Per-layer outputs, channels-last (N, L, C).

    The PyTorch module returns NCW tensors; per the perf review the whole
    chain and the returned feature maps stay NLC (no per-layer relayout HBM
    round trips) and any NCW transpose is left to the final consumer."""
    results = []
    x_nlc = jnp.transpose(x_ncl, (0, 2, 1)).astype(compute_dtype)
    for lyr in layers:
        x_nlc = conv1d_pallas(x_nlc, lyr["w_pt"], lyr["b"],
                              stride=lyr["stride"], padding=lyr["pad"],
                              pad_mode=lyr["pad_mode"], groups=lyr["groups"],
                              apply_tanh=lyr["tanh"],
                              compute_dtype=compute_dtype)
        results.append(x_nlc)
    return results


def reference_forward(layers, x_ncl, compute_dtype=jnp.bfloat16):
    """Pure-JAX reference (lax.conv, NCH), precision-matched: bf16 data, f32 acc."""
    results = []
    x = x_ncl.astype(compute_dtype)
    for lyr in layers:
        pad = lyr["pad"]
        if lyr["pad_mode"] == "reflect" and pad > 0:
            x_in = jnp.pad(x, ((0, 0), (0, 0), (pad, pad)), mode="reflect")
            pads = [(0, 0)]
        else:
            x_in = x
            pads = [(pad, pad)]
        y = jax.lax.conv_general_dilated(
            x_in, lyr["w_pt"].astype(compute_dtype),
            window_strides=(lyr["stride"],), padding=pads,
            dimension_numbers=("NCH", "OIH", "NCH"),
            feature_group_count=lyr["groups"],
            preferred_element_type=jnp.float32)
        y = y + lyr["b"][None, :, None]
        if lyr["tanh"]:
            y = jnp.tanh(y)
        x = y.astype(compute_dtype)
        results.append(x)
    return results


# --------------------------------- main ------------------------------------ #

if __name__ == "__main__":
    compute_dtype = jnp.bfloat16
    # Small deterministic config.  The reference __init__ wires
    # layer_{n_layers+1}'s input channels to the stale nf_prev, so the
    # end-to-end chain only type-checks for downsampling_factor == 1 (exactly
    # as in the PyTorch module); the strided / grouped / band-compressed path
    # is exercised by the standalone check below.
    ndf, n_layers, downsampling_factor = 16, 2, 1

    key = jax.random.PRNGKey(0)
    key, kx, kt = jax.random.split(key, 3)
    x = jax.random.normal(kx, (2, 1, 64), jnp.float32)   # (N, C=1, L) — NCW

    layers = build_discriminator_params(key, ndf, n_layers, downsampling_factor)

    results = discriminator_forward(layers, x, compute_dtype)   # NLC per layer
    results = [jax.block_until_ready(r) for r in results]

    refs = reference_forward(layers, x, compute_dtype)          # NCW (lax.conv)
    for r, ref in zip(results, refs):
        ref_nlc = np.transpose(np.asarray(ref, np.float32), (0, 2, 1))
        assert r.shape == ref_nlc.shape, (r.shape, ref_nlc.shape)
        np.testing.assert_allclose(np.asarray(r, np.float32), ref_nlc,
                                   atol=2e-2, rtol=2e-2)

    # Standalone check of the strided + grouped + group-band path
    # (stride=4, K=41, 64 groups, two 256-wide output tiles -> band compression,
    #  space-to-depth, in-kernel tap loop).
    C_in, C_out, K, stride, groups, N, L = 256, 512, 41, 4, 64, 2, 64
    pad = stride * 5
    kw, kxs = jax.random.split(kt)
    w_pt, b = weight_norm_params(kw, C_out, C_in // groups, K)
    xs = jax.random.normal(kxs, (N, C_in, L), jnp.float32)
    y = conv1d_pallas(jnp.transpose(xs, (0, 2, 1)), w_pt, b,
                      stride=stride, padding=pad, pad_mode="zero",
                      groups=groups, apply_tanh=True,
                      compute_dtype=compute_dtype)
    y = jax.block_until_ready(y)
    ref = jax.lax.conv_general_dilated(
        xs.astype(compute_dtype), w_pt.astype(compute_dtype),
        window_strides=(stride,), padding=[(pad, pad)],
        dimension_numbers=("NCH", "OIH", "NCH"),
        feature_group_count=groups, preferred_element_type=jnp.float32)
    ref = jnp.tanh(ref + b[None, :, None]).astype(compute_dtype)
    ref_nlc = np.transpose(np.asarray(ref, np.float32), (0, 2, 1))
    np.testing.assert_allclose(np.asarray(y, np.float32), ref_nlc,
                               atol=2e-2, rtol=2e-2)

    print("KERNEL_OK")
</pallas_src>

<mosaic_0001>
module attributes {stable_mosaic.version = 11 : i64} {
  func.func @_conv_tap_kernel(%arg0: i32, %arg1: i32, %arg2: i32, %arg3: memref<1x1x64x15xbf16, #tpu.memory_space<vmem>>, %arg4: memref<1x15x128xbf16, #tpu.memory_space<vmem>>, %arg5: memref<1x128xf32, #tpu.memory_space<vmem>>, %arg6: memref<1x64x128xbf16, #tpu.memory_space<vmem>>) attributes {dimension_semantics = [#tpu.dimension_semantics<parallel>, #tpu.dimension_semantics<parallel>, #tpu.dimension_semantics<parallel>], iteration_bounds = array<i64: 2, 1, 1>, scalar_prefetch = 0 : i64, scratch_operands = 0 : i64, tpu.core_type = #tpu.core_type<tc>, window_params = [{transform_indices = @transform_0, window_bounds = array<i64: 1, 1, 64, 15>}, {transform_indices = @transform_1, window_bounds = array<i64: 1, 15, 128>}, {transform_indices = @transform_2, window_bounds = array<i64: 1, 128>}, {transform_indices = @transform_3, window_bounds = array<i64: 1, 64, 128>}]} {
    %c0 = arith.constant 0 : index
    %c0_0 = arith.constant 0 : index
    %c0_1 = arith.constant 0 : index
    %c0_2 = arith.constant 0 : index
    %0 = vector.load %arg3[%c0, %c0_0, %c0_1, %c0_2] : memref<1x1x64x15xbf16, #tpu.memory_space<vmem>>, vector<1x1x64x15xbf16>
    %1 = vector.shape_cast %0 : vector<1x1x64x15xbf16> to vector<64x15xbf16>
    %c0_3 = arith.constant 0 : index
    %c0_4 = arith.constant 0 : index
    %c0_5 = arith.constant 0 : index
    %2 = vector.load %arg4[%c0_3, %c0_4, %c0_5] : memref<1x15x128xbf16, #tpu.memory_space<vmem>>, vector<1x15x128xbf16>
    %3 = vector.shape_cast %2 : vector<1x15x128xbf16> to vector<15x128xbf16>
    %cst = arith.constant dense<0.000000e+00> : vector<64x128xf32>
    %4 = tpu.matmul %1, %3, %cst {dimension_numbers = #tpu.dot_dimension_numbers<[1], [0], [0], [1], [0, 0, 1, 1], [], []>} : vector<64x15xbf16>, vector<15x128xbf16>, vector<64x128xf32> -> vector<64x128xf32>
    %c0_6 = arith.constant 0 : index
    %c0_7 = arith.constant 0 : index
    %5 = vector.load %arg5[%c0_6, %c0_7] : memref<1x128xf32, #tpu.memory_space<vmem>>, vector<1x128xf32>
    %6 = vector.broadcast %5 : vector<1x128xf32> to vector<64x128xf32>
    %7 = arith.addf %4, %6 : vector<64x128xf32>
    %8 = math.tanh %7 : vector<64x128xf32>
    %9 = arith.truncf %8 : vector<64x128xf32> to vector<64x128xbf16>
    %c0_8 = arith.constant 0 : index
    %c0_9 = arith.constant 0 : index
    %c0_10 = arith.constant 0 : index
    %10 = vector.load %arg6[%c0_8, %c0_9, %c0_10] : memref<1x64x128xbf16, #tpu.memory_space<vmem>>, vector<1x64x128xbf16>
    %11 = vector.shape_cast %10 : vector<1x64x128xbf16> to vector<64x128xbf16>
    %12 = vector.shape_cast %9 : vector<64x128xbf16> to vector<1x64x128xbf16>
    tpu.vector_store %arg6[%c0_8, %c0_9, %c0_10], %12 {strides = array<i32>} : memref<1x64x128xbf16, #tpu.memory_space<vmem>>, vector<1x64x128xbf16>,
    return
  }
  func.func @transform_0(%arg0: i32, %arg1: i32, %arg2: i32) -> (i32, i32, i32, i32) {
    %c0_i32 = arith.constant 0 : i32
    %c0_i32_0 = arith.constant 0 : i32
    %c0_i32_1 = arith.constant 0 : i32
    return %arg0, %arg2, %c0_i32, %c0_i32_0 : i32, i32, i32, i32
  }
  func.func @transform_1(%arg0: i32, %arg1: i32, %arg2: i32) -> (i32, i32, i32) {
    %c0_i32 = arith.constant 0 : i32
    %c0_i32_0 = arith.constant 0 : i32
    %c0_i32_1 = arith.constant 0 : i32
    return %arg1, %c0_i32, %c0_i32_0 : i32, i32, i32
  }
  func.func @transform_2(%arg0: i32, %arg1: i32, %arg2: i32) -> (i32, i32) {
    %c0_i32 = arith.constant 0 : i32
    %c0_i32_0 = arith.constant 0 : i32
    return %c0_i32, %arg1 : i32, i32
  }
  func.func @transform_3(%arg0: i32, %arg1: i32, %arg2: i32) -> (i32, i32, i32) {
    %c0_i32 = arith.constant 0 : i32
    return %arg0, %arg2, %arg1 : i32, i32, i32
  }
}

</mosaic_0001>

<llo_original>
// kernel: tpu_custom_call.1
$region0: #{tpu_custom_call.1}
  #allocation0 [shape = 'u32[]', space=smem, size = 0x4, offset = 0x4, fixed_abs, tag = 'smem constant byte address 0x4 - core index']
  #allocation1 [shape = 'u32[144,128]{1,0:T(1,128)}', space=vmem, size = 0x12000, scoped, tag = 'internal scratch']
  %s0 = inlined_call_operand.vmem [shape: bf16[2,1,64,15], index: 0, kind: input, shape index: {}]
  %s1 = inlined_call_operand.vmem [shape: bf16[1,15,128], index: 1, kind: input, shape index: {}]
  %s2 = inlined_call_operand.vmem [shape: f32[1,128], index: 2, kind: input, shape index: {}]
  %s3 = inlined_call_operand.hbm [shape: bf16[2,64,128], index: 3, kind: output, shape index: {}]
  %s4 = sld [smem:[#allocation0]]
  $region45: #{tpu_custom_call.1} parent=0
    _
  %s6 = ssub.s32 1, %s4
  %s7 = scalar_select 0, %s6, %s4
  $region1: #{tpu_custom_call.1} parent=0
    #allocation2 [shape = 'u8[32768]{0}', space=vmem, size = 0x8000, scoped, tag = 'output window, operand 0']
    #allocation3 [shape = 's32[2]{0}', space=sflag, size = 0x8, scoped, tag = 'scoped memory for tpu_custom_call.1']
    %8 = vsyncpa [#allocation3], 0
    %s9 = scalar_lea.sflag [#allocation3], 1
    %10 = vsyncpa %s9, 0
    loop: start=0, step=1, limit=4
    $region2: #{tpu_custom_call.1} parent=1 // loop_pre_header
      _
    $region3: #{tpu_custom_call.1} parent=1 // loop_header
      %s12 = sphi 0, %s16
      %p13 = scmp.ge.s32.totalorder %s12, 4
      %s19 = sphi 0, %s38
      %s20 = sphi 0, %s34
      %s21 = sphi 0, %s30
      %s22 = sphi 0, %s19
      %s23 = sphi 0, %s20
      %s24 = sphi 0, %s21
      %s25 = sphi 0, %s22
      %s26 = sphi 0, %s23
      %s27 = sphi 0, %s24
      %s43 = sphi 0, %s45
      %s46 = sphi 0, %s43
      %s47 = sphi 0, %s46
      %s63 = sphi 0, %s47
      %s69 = sphi 0, %s71
      %s72 = sphi 0, %s69
      %s73 = sphi 0, %s72
      %s89 = sphi 0, %s73
      %s95 = sphi 0, %s97
      %s98 = sphi 0, %s95
      %s99 = sphi 0, %s98
      %s115 = sphi 0, %s99
      %s125 = sphi 0, %s127
      %s128 = sphi 0, %s125
      %s129 = sphi 0, %s128
      %s145 = sphi 0, %s129
    $region4: #{tpu_custom_call.1} parent=1 // loop_header_branch
      %15 = sbr.rel (%p13) target = $region8
    $region5: #{tpu_custom_call.1} parent=1 // loop_body
      %s17 = ssub.s32 %s12, 1
      %s18 = ssub.s32 %s12, 2
      %s28 = sadd.s32 1, %s21
      %p29 = scmp.ge.s32.totalorder %s28, 1
      %s30 = scalar_select %p29, 0, %s28
      %s31 = sadd.s32 1, %s20
      %s32 = scalar_select %p29, %s31, %s20
      %p33 = scmp.ge.s32.totalorder %s32, 1
      %s34 = scalar_select %p33, 0, %s32
      %s35 = sadd.s32 1, %s19
      %s36 = scalar_select %p33, %s35, %s19
      %p37 = scmp.ge.s32.totalorder %s36, 2
      %s38 = scalar_select %p37, 0, %s36
      %s39 = ssub.s32 %s19, %s38
      %s40 = ssub.s32 %s21, %s30
      %s41 = sor.u32 %s39, %s40
      %p42 = scmp.eq.s32.totalorder %s41, 0
      %s44 = sadd.s32 %s43, 1
      %s45 = scalar_select %p42, %s43, %s44
      %p48 = pneg %p42
      %p49 = scmp.eq.s32.totalorder %s12, 1
      %p50 = por %p48, %p49
      %p51 = scmp.ne.s32.totalorder %s43, %s46
      %p52 = scmp.eq.s32.totalorder %s12, 0
      %p53 = por %p51, %p52
      %p54 = scmp.ne.s32.totalorder %s43, %s46
      %p55 = scmp.eq.s32.totalorder %s17, 1
      %p56 = por %p54, %p55
      %p57 = scmp.ne.s32.totalorder %s46, %s47
      %p58 = scmp.eq.s32.totalorder %s17, 0
      %p59 = por %p57, %p58
      %p60 = scmp.ne.s32.totalorder %s46, %s47
      %p61 = scmp.eq.s32.totalorder %s18, 1
      %p62 = por %p60, %p61
      %p64 = scmp.ne.s32.totalorder %s47, %s63
      %p65 = scmp.eq.s32.totalorder %s18, 0
      %p66 = por %p64, %p65
      %s67 = ssub.s32 %s20, %s34
      %p68 = scmp.eq.s32.totalorder %s67, 0
      %s70 = sadd.s32 %s69, 1
      %s71 = scalar_select %p68, %s69, %s70
      %p74 = pneg %p68
      %p75 = scmp.eq.s32.totalorder %s12, 1
      %p76 = por %p74, %p75
      %p77 = scmp.ne.s32.totalorder %s69, %s72
      %p78 = scmp.eq.s32.totalorder %s12, 0
      %p79 = por %p77, %p78
      %p80 = scmp.ne.s32.totalorder %s69, %s72
      %p81 = scmp.eq.s32.totalorder %s17, 1
      %p82 = por %p80, %p81
      %p83 = scmp.ne.s32.totalorder %s72, %s73
      %p84 = scmp.eq.s32.totalorder %s17, 0
      %p85 = por %p83, %p84
      %p86 = scmp.ne.s32.totalorder %s72, %s73
      %p87 = scmp.eq.s32.totalorder %s18, 1
      %p88 = por %p86, %p87
      %p90 = scmp.ne.s32.totalorder %s73, %s89
      %p91 = scmp.eq.s32.totalorder %s18, 0
      %p92 = por %p90, %p91
      %s93 = ssub.s32 %s20, %s34
      %p94 = scmp.eq.s32.totalorder %s93, 0
      %s96 = sadd.s32 %s95, 1
      %s97 = scalar_select %p94, %s95, %s96
      %p100 = pneg %p94
      %p101 = scmp.eq.s32.totalorder %s12, 1
      %p102 = por %p100, %p101
      %p103 = scmp.ne.s32.totalorder %s95, %s98
      %p104 = scmp.eq.s32.totalorder %s12, 0
      %p105 = por %p103, %p104
      %p106 = scmp.ne.s32.totalorder %s95, %s98
      %p107 = scmp.eq.s32.totalorder %s17, 1
      %p108 = por %p106, %p107
      %p109 = scmp.ne.s32.totalorder %s98, %s99
      %p110 = scmp.eq.s32.totalorder %s17, 0
      %p111 = por %p109, %p110
      %p112 = scmp.ne.s32.totalorder %s98, %s99
      %p113 = scmp.eq.s32.totalorder %s18, 1
      %p114 = por %p112, %p113
      %p116 = scmp.ne.s32.totalorder %s99, %s115
      %p117 = scmp.eq.s32.totalorder %s18, 0
      %p118 = por %p116, %p117
      %s119 = ssub.s32 %s19, %s38
      %s120 = ssub.s32 %s21, %s30
      %s121 = sor.u32 %s119, %s120
      %s122 = ssub.s32 %s20, %s34
      %s123 = sor.u32 %s121, %s122
      %p124 = scmp.eq.s32.totalorder %s123, 0
      %s126 = sadd.s32 %s125, 1
      %s127 = scalar_select %p124, %s125, %s126
      %p130 = pneg %p124
      %p131 = scmp.eq.s32.totalorder %s12, 1
      %p132 = por %p130, %p131
      %p133 = scmp.ne.s32.totalorder %s125, %s128
      %p134 = scmp.eq.s32.totalorder %s12, 0
      %p135 = por %p133, %p134
      %p136 = scmp.ne.s32.totalorder %s125, %s128
      %p137 = scmp.eq.s32.totalorder %s17, 1
      %p138 = por %p136, %p137
      %p139 = scmp.ne.s32.totalorder %s128, %s129
      %p140 = scmp.eq.s32.totalorder %s17, 0
      %p141 = por %p139, %p140
      %p142 = scmp.ne.s32.totalorder %s128, %s129
      %p143 = scmp.eq.s32.totalorder %s18, 1
      %p144 = por %p142, %p143
      %p146 = scmp.ne.s32.totalorder %s129, %s145
      %p147 = scmp.eq.s32.totalorder %s18, 0
      %p148 = por %p146, %p147
      %p149 = scmp.le.s32.totalorder 1, %s12
      %p150 = scmp.lt.s32.totalorder %s12, 3
      %p151 = pnand %p149, %p150
      %p152 = pneg %p151
      // Predicated region
      $region9: #{tpu_custom_call.1} parent=5 // pred_check
        _
      $region10: #{tpu_custom_call.1} parent=5 // pred_check_branch
        %154 = sbr.rel (%p151) target = $region12
      $region11: #{tpu_custom_call.1} parent=5 // pred_region
        %s155 = ssub.s32 %s12, 1
        // Predicated region
        $region13: #{tpu_custom_call.1} parent=11 // pred_check
          %p156 = pneg %p85
        $region14: #{tpu_custom_call.1} parent=11 // pred_check_branch
          %158 = sbr.rel (%p156) target = $region16
        $region15: #{tpu_custom_call.1} parent=11 // pred_region
          %p159 = scmp.lt.s32.totalorder %s23, 0
          %s160 = scalar_select %p159, %s23, 0
          %s161 = smul.addr %s160, 2
          %s162 = smul.addr %s161, 4
          %s163 = scalar_lea.vmem %s1, %s162
        $region16: #{tpu_custom_call.1} parent=11 // pred_fallthru
          _
        // Predicated region
        $region17: #{tpu_custom_call.1} parent=11 // pred_check
          %p164 = pneg %p111
        $region18: #{tpu_custom_call.1} parent=11 // pred_check_branch
          %166 = sbr.rel (%p164) target = $region20
        $region19: #{tpu_custom_call.1} parent=11 // pred_region
          %p167 = scmp.lt.s32.totalorder %s23, 0
          %s168 = scalar_select %p167, %s23, 0
          %s169 = scalar_lea.vmem %s2, %s168
        $region20: #{tpu_custom_call.1} parent=11 // pred_fallthru
          _
      $region12: #{tpu_custom_call.1} parent=5 // pred_fallthru
        _
      %p170 = scmp.lt.s32.totalorder %s12, 2
      // Predicated region
      $region21: #{tpu_custom_call.1} parent=5 // pred_check
        %p171 = pneg %p170
      $region22: #{tpu_custom_call.1} parent=5 // pred_check_branch
        %173 = sbr.rel (%p171) target = $region24
      $region23: #{tpu_custom_call.1} parent=5 // pred_region
        // Predicated region
        $region25: #{tpu_custom_call.1} parent=23 // pred_check
          %p174 = pneg %p53
        $region26: #{tpu_custom_call.1} parent=23 // pred_check_branch
          %176 = sbr.rel (%p174) target = $region28
        $region27: #{tpu_custom_call.1} parent=23 // pred_region
          %p177 = scmp.lt.s32.totalorder %s19, 1
          %s178 = scalar_select %p177, %s19, 1
          %p179 = scmp.lt.s32.totalorder %s21, 0
          %s180 = scalar_select %p179, %s21, 0
          %s181 = smul.addr %s180, 8
          %s182 = smul.addr %s178, 8
          %s183 = sadd.s32 %s181, %s182
          %s184 = smul.addr %s183, 4
          %s185 = scalar_lea.vmem %s0, %s184
        $region28: #{tpu_custom_call.1} parent=23 // pred_fallthru
          _
      $region24: #{tpu_custom_call.1} parent=5 // pred_fallthru
        _
      %p186 = scmp.le.s32.totalorder 1, %s12
      %p187 = scmp.lt.s32.totalorder %s12, 3
      %p188 = pnand %p186, %p187
      %p189 = pneg %p188
      // Predicated region
      $region29: #{tpu_custom_call.1} parent=5 // pred_check
        _
      $region30: #{tpu_custom_call.1} parent=5 // pred_check_branch
        %191 = sbr.rel (%p188) target = $region32
      $region31: #{tpu_custom_call.1} parent=5 // pred_region
        %s192 = ssub.s32 %s12, 1
        %p193 = scmp.lt.s32.totalorder %s22, 1
        %s194 = scalar_select %p193, %s22, 1
        %p195 = scmp.lt.s32.totalorder %s24, 0
        %s196 = scalar_select %p195, %s24, 0
        %s197 = smul.addr %s196, 8
        %s198 = smul.addr %s194, 8
        %s199 = sadd.s32 %s197, %s198
        %s200 = smul.addr %s199, 4
        %s201 = scalar_lea.vmem %s0, %s200
        %p202 = pneg %p59
        %p203 = pneg %p56
        %p204 = scmp.lt.s32.totalorder %s23, 0
        %s205 = scalar_select %p204, %s23, 0
        %s206 = smul.addr %s205, 2
        %s207 = smul.addr %s206, 4
        %s208 = scalar_lea.vmem %s1, %s207
        %p209 = pneg %p85
        %p210 = pneg %p82
        %p211 = scmp.lt.s32.totalorder %s23, 0
        %s212 = scalar_select %p211, %s23, 0
        %s213 = scalar_lea.vmem %s2, %s212
        %p214 = pneg %p111
        %p215 = pneg %p108
        %p216 = pneg %p141
        %p217 = pneg %p138
        %s218 = sand.u32 %s128, 1
        %s219 = scalar_lea.sflag [#allocation3], %s218
        %s220 = sand.u32 %s128, 1
        %s221 = smul.addr %s220, 32
        %s222 = scalar_lea.vmem [#allocation2], %s221
        %p223 = scmp.lt.s32.totalorder %s22, 1
        %s224 = scalar_select %p223, %s22, 1
        %p225 = scmp.lt.s32.totalorder %s24, 0
        %s226 = scalar_select %p225, %s24, 0
        %s227 = smul.addr %s226, 8
        %s228 = smul.addr %s224, 8
        %s229 = sadd.s32 %s227, %s228
        %s230 = smul.addr %s229, 4
        %s231 = scalar_lea.vmem %s0, %s230
        %p232 = scmp.lt.s32.totalorder %s23, 0
        %s233 = scalar_select %p232, %s23, 0
        %s234 = smul.addr %s233, 2
        %s235 = smul.addr %s234, 4
        %s236 = scalar_lea.vmem %s1, %s235
        %p237 = scmp.lt.s32.totalorder %s23, 0
        %s238 = scalar_select %p237, %s23, 0
        %s239 = scalar_lea.vmem %s2, %s238
        %s240 = smul.u32 8, %s24
        %v242 = vld [vmem:[%s231] sm:$0xf]
        %v243 = vld [vmem:[%s231 + $0x4] sm:$0xf]
        %v244 = vld [vmem:[%s231 + $0x8] sm:$0xf]
        %v245 = vld [vmem:[%s231 + $0xc] sm:$0xf]
        %v246 = vld [vmem:[%s231 + $0x10] sm:$0xf]
        %v247 = vld [vmem:[%s231 + $0x14] sm:$0xf]
        %v248 = vld [vmem:[%s231 + $0x18] sm:$0xf]
        %v249 = vld [vmem:[%s231 + $0x1c] sm:$0xf]
        %v250 = vld [vmem:[%s236] sm:$0xf]
        %v251 = vld [vmem:[%s236 + $0x4] sm:$0xf]
        %v252 = vld [vmem:[%s239] sm:$0x1]
        %v254 = vlaneseq
        %v255 = vshrl.u32 %v254, 7
        %v256 = vsub.s32 0, %v255
        %v257 = vrot.slane %v252, %v256
        %v267 = vunpack.c.l.b16 %v242
        %v268 = vunpack.c.l.b16 %v243
        %v269 = vunpack.c.l.b16 %v244
        %v270 = vunpack.c.l.b16 %v245
        %v271 = vunpack.c.l.b16 %v246
        %v272 = vunpack.c.l.b16 %v247
        %v273 = vunpack.c.l.b16 %v248
        %v274 = vunpack.c.l.b16 %v249
        %v275 = vpack.c.b16 %v268, %v267
        %v276 = vpack.c.b16 %v270, %v269
        %v277 = vpack.c.b16 %v272, %v271
        %v278 = vpack.c.b16 %v274, %v273
        %v281 = vunpack.c.l.b16 %v250
        %v282 = vunpack.c.l.b16 %v251
        %v283 = vpack.c.b16 %v282, %v281
        %vm284 = vcmask 121856
        %v286 = vsel %vm284, %v275, 0
        %v289 = vsel %vm284, %v276, 0
        %v292 = vsel %vm284, %v277, 0
        %v295 = vsel %vm284, %v278, 0
        %vm297 = vcmask 1046528
        %vm298 = vcmask 1047552
        %v299 = vsel %vm297, 4294967295, 65535
        %v300 = vsel %vm298, %v299, 0
        %v302 = vand.u32 %v283, %v300
        %304 = vmatprep.subr.bf16.mxu0 0
        %305 = vmatpush1.bf16.msra.mxu0 %v302
        %306 = vmatprep.subr.bf16.mxu0 0
        %307 = vmatpush1.bf16.msra.mxu0 0
        %308 = vmatprep.subr.bf16.mxu0 0
        %309 = vmatpush1.bf16.msra.mxu0 0
        %310 = vmatprep.subr.bf16.mxu0 0
        %311 = vmatpush1.bf16.msra.mxu0 0
        %312 = vmatprep.subr.bf16.mxu0 0
        %313 = vmatpush1.bf16.msra.mxu0 0
        %314 = vmatprep.subr.bf16.mxu0 0
        %315 = vmatpush1.bf16.msra.mxu0 0
        %316 = vmatprep.subr.bf16.mxu0 0
        %317 = vmatpush1.bf16.msra.mxu0 0
        %318 = vmatprep.subr.bf16.mxu0 0
        %319 = vmatpush1.bf16.msra.mxu0 0
        %320 = vmatprep.subr.bf16.mxu0 0
        %321 = vmatpush1.bf16.msra.mxu0 0
        %322 = vmatprep.subr.bf16.mxu0 0
        %323 = vmatpush1.bf16.msra.mxu0 0
        %324 = vmatprep.subr.bf16.mxu0 0
        %325 = vmatpush1.bf16.msra.mxu0 0
        %326 = vmatprep.subr.bf16.mxu0 0
        %327 = vmatpush1.bf16.msra.mxu0 0
        %328 = vmatprep.subr.bf16.mxu0 0
        %329 = vmatpush1.bf16.msra.mxu0 0
        %330 = vmatprep.subr.bf16.mxu0 0
        %331 = vmatpush1.bf16.msra.mxu0 0
        %332 = vmatprep.subr.bf16.mxu0 0
        %333 = vmatpush1.bf16.msra.mxu0 0
        %334 = vmatprep.subr.bf16.mxu0 0
        %335 = vmatpush1.bf16.msra.mxu0 0
        %336 = vmatprep.mubr.bf16.mxu0 0
        %337 = vmatmul.mubr.bf16.gmra.mrb[0].mxu0 %v286
        %v338 = vpop.f32.mrb[0].mxu0
        %v339 = vadd.f32 %v257, %v338
        %v340 = vpop.f32.mrb[0].mxu0
        %v341 = vpop.f32.mrb[0].mxu0
        %v342 = vadd.f32 %v257, %v341
        %v343 = vpop.f32.mrb[0].mxu0
        %344 = vmatprep.mubr.bf16.mxu0 0
        %345 = vmatmul.mubr.bf16.gmra.mrb[0].mxu0 %v289
        %v346 = vpop.f32.mrb[0].mxu0
        %v347 = vadd.f32 %v257, %v346
        %v348 = vpop.f32.mrb[0].mxu0
        %v349 = vpop.f32.mrb[0].mxu0
        %v350 = vadd.f32 %v257, %v349
        %v351 = vpop.f32.mrb[0].mxu0
        %352 = vmatprep.mubr.bf16.mxu0 0
        %353 = vmatmul.mubr.bf16.gmra.mrb[0].mxu0 %v292
        %v354 = vpop.f32.mrb[0].mxu0
        %v355 = vadd.f32 %v257, %v354
        %v356 = vpop.f32.mrb[0].mxu0
        %v357 = vpop.f32.mrb[0].mxu0
        %v358 = vadd.f32 %v257, %v357
        %v359 = vpop.f32.mrb[0].mxu0
        %360 = vmatprep.mubr.bf16.mxu0 0
        %361 = vmatmul.mubr.bf16.gmra.mrb[0].mxu0 %v295
        %v362 = vpop.f32.mrb[0].mxu0
        %v363 = vadd.f32 %v257, %v362
        %v364 = vpop.f32.mrb[0].mxu0
        %v365 = vpop.f32.mrb[0].mxu0
        %v366 = vadd.f32 %v257, %v365
        %v367 = vpop.f32.mrb[0].mxu0
        %368 = vdwg.mxu0
        %v369 = vtanh.pop %v339
        %v370 = vtanh.pop %v342
        %v371 = vtanh.pop %v347
        %v372 = vtanh.pop %v350
        %v373 = vtanh.pop %v355
        %v374 = vtanh.pop %v358
        %v375 = vtanh.pop %v363
        %v376 = vtanh.pop %v366
        %v377 = vpack.c.bf16 %v370, %v369
        %v378 = vpack.c.bf16 %v372, %v371
        %v379 = vpack.c.bf16 %v374, %v373
        %v380 = vpack.c.bf16 %v376, %v375
        %v385 = vunpack.c.l.b16 %v377
        %v386 = vunpack.c.h.b16 %v377
        %v387 = vunpack.c.l.b16 %v378
        %v388 = vunpack.c.h.b16 %v378
        %v389 = vunpack.c.l.b16 %v379
        %v390 = vunpack.c.h.b16 %v379
        %v391 = vunpack.c.l.b16 %v380
        %v392 = vunpack.c.h.b16 %v380
        %v393 = vpack.c.b16 %v385, %v385
        %v394 = vpack.c.b16 %v386, %v386
        %v395 = vpack.c.b16 %v387, %v387
        %v396 = vpack.c.b16 %v388, %v388
        %v397 = vpack.c.b16 %v389, %v389
        %v398 = vpack.c.b16 %v390, %v390
        %v399 = vpack.c.b16 %v391, %v391
        %v400 = vpack.c.b16 %v392, %v392
        %409 = vst [vmem:[%s222] sm:$0xf] %v393
        %410 = vst [vmem:[%s222 + $0x4] sm:$0xf] %v394
        %411 = vst [vmem:[%s222 + $0x8] sm:$0xf] %v395
        %412 = vst [vmem:[%s222 + $0xc] sm:$0xf] %v396
        %413 = vst [vmem:[%s222 + $0x10] sm:$0xf] %v397
        %414 = vst [vmem:[%s222 + $0x14] sm:$0xf] %v398
        %415 = vst [vmem:[%s222 + $0x18] sm:$0xf] %v399
        %416 = vst [vmem:[%s222 + $0x1c] sm:$0xf] %v400
        %s417 = sand.u32 %s128, 1
        %s418 = scalar_lea.sflag [#allocation3], %s417
        %s419 = sand.u32 %s128, 1
        %s420 = smul.addr %s419, 32
        %s421 = scalar_lea.vmem [#allocation2], %s420
        // Predicated region
        $region33: #{tpu_custom_call.1} parent=31 // pred_check
          %p422 = pneg %p138
        $region34: #{tpu_custom_call.1} parent=31 // pred_check_branch
          %424 = sbr.rel (%p422) target = $region36
        $region35: #{tpu_custom_call.1} parent=31 // pred_region
          %s425 = smul.u32 8, %s24
          %s427 = ssub.s32 512, 512
          %428 = vsyncadd %s418, %s427
          %s429 = sadd.s32 %s23, %s425
          %s430 = smul.addr %s22, 8
          %s431 = sadd.s32 %s429, %s430
          %s432 = smul.addr %s431, 64
          %s433 = scalar_lea.hbm %s3, %s432
          %s434 = sshll.u32 %s421, 4
          %s435 = int_to_ptr.vmem [resolvable:$true] %s434
          %440 = dma.vmem_to_hbm [thread:$0]  %s435, 512, %s433, %s418, 64, 64, 4
        $region36: #{tpu_custom_call.1} parent=31 // pred_fallthru
          _
      $region32: #{tpu_custom_call.1} parent=5 // pred_fallthru
        _
      %p441 = scmp.le.s32.totalorder 2, %s12
      // Predicated region
      $region37: #{tpu_custom_call.1} parent=5 // pred_check
        %p442 = pneg %p441
      $region38: #{tpu_custom_call.1} parent=5 // pred_check_branch
        %444 = sbr.rel (%p442) target = $region40
      $region39: #{tpu_custom_call.1} parent=5 // pred_region
        %s445 = ssub.s32 %s12, 2
        // Predicated region
        $region41: #{tpu_custom_call.1} parent=39 // pred_check
          %p446 = pneg %p144
        $region42: #{tpu_custom_call.1} parent=39 // pred_check_branch
          %448 = sbr.rel (%p446) target = $region44
        $region43: #{tpu_custom_call.1} parent=39 // pred_region
          %s449 = sand.u32 %s129, 1
          %s450 = scalar_lea.sflag [#allocation3], %s449
          %s451 = sand.u32 %s129, 1
          %s452 = smul.addr %s451, 32
          %s453 = scalar_lea.vmem [#allocation2], %s452
          %454 = dma.done %s450, 512
        $region44: #{tpu_custom_call.1} parent=39 // pred_fallthru
          _
      $region40: #{tpu_custom_call.1} parent=5 // pred_fallthru
        _
    $region6: #{tpu_custom_call.1} parent=1 // loop_footer
      %s16 = sadd.s32 1, %s12
    $region7: #{tpu_custom_call.1} parent=1 // loop_footer_branch
      %11 = sbr.rel target = $region3
    $region8: #{tpu_custom_call.1} parent=1 // loop_exit
      _
    %455 = vsyncpa [#allocation3], 1
    %s456 = scalar_lea.sflag [#allocation3], 1
    %457 = vsyncpa %s456, 1

</llo_original>
